<compile_context>
chip_gen: v7x
topology: tpu7x:2x2x1
jax: 0.10.0
libtpu: 0.0.40
codegen_flags: <defaults>
</compile_context>

<pallas_src>
import math

import jax
import jax.numpy as jnp
from jax.experimental import pallas as pl
from jax.experimental.pallas import tpu as pltpu


def _make_l_exp_kernel(mean_val: float, inv_scale: float):
    def kernel(x_ref, ph_ref, pw_ref, o_ref):
        w = x_ref.shape[-1]
        # (1, C, TH, W) native dtype -> (C*TH, W); free relayout when TH is a
        # multiple of the dtype's sublane tile (guaranteed by the tiler).
        x2 = x_ref[...].reshape(-1, w)

        # Height + channel pooling first (thp, C*TH) @ (C*TH, W) -> (thp, W),
        # native-dtype operands feeding the MXU with f32 accumulation.
        left = jnp.dot(ph_ref[...], x2, preferred_element_type=jnp.float32)
        # Width pooling: (thp, W) @ (W, wp) -> (thp, wp), then one f32 scale
        # 1/(p*p*C) reproduces avg_pool(channel_mean(x)) exactly.
        pooled = jnp.dot(left, pw_ref[...],
                         preferred_element_type=jnp.float32) * jnp.float32(inv_scale)

        diff = pooled - jnp.float32(mean_val)
        partial = jnp.sum(diff * diff)

        # Lane-dense per-step partial-sum block (own block per grid step ->
        # both grid axes can be "parallel").
        o_ref[...] = jnp.full(o_ref.shape, partial, dtype=jnp.float32)

    return kernel


def _pick_row_tile(h: int, patch_size: int, c: int, w: int, itemsize: int,
                   b: int, budget_bytes: int = 8 << 20) -> int:
    """Pick a row tile TH that (a) is a multiple of lcm(patch_size, sublane
    tile) so in-kernel reshapes are free and pooling stays aligned, (b) divides
    H, (c) keeps the native-dtype (C, TH, W) block under `budget_bytes`, and
    (d) leaves at least 2 grid steps when possible (v7x megacore)."""
    sub = max(8, 32 // max(itemsize, 1))                       # sublane tile for dtype
    align = (patch_size * sub) // math.gcd(patch_size, sub)    # lcm(patch, sublane)
    cands = [d for d in range(align, h + 1, align) if h % d == 0]
    if not cands:
        # TODO(synk): H with no aligned divisor -> use a cdiv grid with a
        # masked/ragged last tile instead of falling back to full H.
        cands = [h]

    fitting = [d for d in cands if c * d * w * itemsize <= budget_bytes]
    th = max(fitting) if fitting else min(cands)

    # v7x has 2 TensorCores; "parallel" grid axes are sharded across them.
    # Guarantee >= 2 grid steps when the whole image would fit in one block.
    if b * (h // th) < 2:
        smaller = [d for d in cands if d < th]
        if smaller:
            th = max(smaller)
    return th


def l_exp_pallas(x: jax.Array, patch_size: int, mean_val: float) -> jax.Array:
    """Pallas TPU version of L_exp.forward. x: (B, C, H, W) (NCHW), any float dtype."""
    b, c, h, w = x.shape
    assert h % patch_size == 0 and w % patch_size == 0
    hp, wp = h // patch_size, w // patch_size

    itemsize = jnp.dtype(x.dtype).itemsize
    th = _pick_row_tile(h, patch_size, c, w, itemsize, b)
    nt = h // th
    thp = th // patch_size

    # Ph: (thp, C*TH) 0/1 indicator in x's dtype (exact in bf16); column
    # k = ch*TH + j selects rows j of every channel belonging to patch row r.
    rows_in_ch = jnp.arange(c * th) % th
    ph = ((rows_in_ch[None, :] // patch_size)
          == jnp.arange(thp)[:, None]).astype(x.dtype)
    # Pw: (W, wp) 0/1 indicator, kept f32 (second matmul's lhs is already f32).
    # For very large W (>= ~2048) a bf16 Pw would halve its VMEM footprint.
    pw = ((jnp.arange(w)[:, None] // patch_size)
          == jnp.arange(wp)[None, :]).astype(jnp.float32)

    # The combined scale: channel mean (1/C) and 2-D average pool (1/p^2).
    inv_scale = 1.0 / float(patch_size * patch_size * c)

    # VMEM accounting: double-buffered native-dtype input blocks, resident
    # Ph/Pw (count x2 for safety), f32 matmul intermediates, plus margin.
    block_bytes = c * th * w * itemsize
    ph_bytes = thp * c * th * itemsize
    pw_bytes = w * wp * 4
    inter_bytes = thp * w * 4 + thp * wp * 4
    footprint = 2 * block_bytes + 2 * (ph_bytes + pw_bytes) + inter_bytes + (2 << 20)
    vmem_limit = int(min(max(footprint, 32 << 20), 56 << 20))  # < v7x 64 MiB physical

    out = pl.pallas_call(
        _make_l_exp_kernel(float(mean_val), inv_scale),
        out_shape=jax.ShapeDtypeStruct((b * nt, 1, 128), jnp.float32),
        grid_spec=pltpu.PrefetchScalarGridSpec(
            num_scalar_prefetch=0,
            grid=(b, nt),
            in_specs=[
                pl.BlockSpec((1, c, th, w), lambda i, t: (i, 0, t, 0)),  # row tile
                pl.BlockSpec((thp, c * th), lambda i, t: (0, 0)),        # Ph (resident)
                pl.BlockSpec((w, wp), lambda i, t: (0, 0)),              # Pw (resident)
            ],
            out_specs=pl.BlockSpec((1, 1, 128), lambda i, t: (i * nt + t, 0, 0)),
        ),
        compiler_params=pltpu.CompilerParams(
            dimension_semantics=("parallel", "parallel"),     # independent partials
            vmem_limit_bytes=vmem_limit),
    )(x, ph, pw)

    inv_count = 1.0 / float(b * hp * wp)
    return jnp.sum(out[:, 0, 0]) * jnp.float32(inv_count)


def l_exp_reference(x, patch_size, mean_val):
    """Pure-JAX reference matching the PyTorch semantics."""
    b, c, h, w = x.shape
    hp, wp = h // patch_size, w // patch_size
    xm = jnp.mean(x.astype(jnp.float32), axis=1)                    # (B, H, W)
    pooled = xm.reshape(b, hp, patch_size, wp, patch_size).mean(axis=(2, 4))
    return jnp.mean((pooled - jnp.float32(mean_val)) ** 2)


if __name__ == "__main__":
    # Module hyperparameters (as used in Zero-DCE training): patch 4, target 0.6.
    patch_size = 4
    mean_val = 0.6

    key = jax.random.PRNGKey(0)
    x = jax.random.uniform(key, (2, 4, 16, 16), dtype=jnp.float32)  # NCHW

    # f32 path
    d = l_exp_pallas(x, patch_size, mean_val)
    d = jax.block_until_ready(d)
    d_ref = l_exp_reference(x, patch_size, mean_val)
    assert jnp.allclose(d, d_ref, atol=1e-5, rtol=1e-5), (d, d_ref)

    # bf16 path (native-dtype MXU feed, f32 accumulation)
    xb = x.astype(jnp.bfloat16)
    db = jax.block_until_ready(l_exp_pallas(xb, patch_size, mean_val))
    db_ref = l_exp_reference(xb, patch_size, mean_val)
    assert jnp.allclose(db, db_ref, atol=1e-2, rtol=1e-2), (db, db_ref)

    print("KERNEL_OK")
</pallas_src>

<mosaic_0001>
module attributes {stable_mosaic.version = 11 : i64} {
  func.func @kernel(%arg0: i32, %arg1: i32, %arg2: memref<1x4x16x16xf32, #tpu.memory_space<vmem>>, %arg3: memref<4x64xf32, #tpu.memory_space<vmem>>, %arg4: memref<16x4xf32, #tpu.memory_space<vmem>>, %arg5: memref<1x1x128xf32, #tpu.memory_space<vmem>>) attributes {dimension_semantics = [#tpu.dimension_semantics<parallel>, #tpu.dimension_semantics<parallel>], iteration_bounds = array<i64: 2, 1>, scalar_prefetch = 0 : i64, scratch_operands = 0 : i64, tpu.core_type = #tpu.core_type<tc>, window_params = [{transform_indices = @transform_0, window_bounds = array<i64: 1, 4, 16, 16>}, {pipeline_mode = #tpu.pipeline_mode<synchronous>, transform_indices = @transform_1, window_bounds = array<i64: 4, 64>}, {pipeline_mode = #tpu.pipeline_mode<synchronous>, transform_indices = @transform_2, window_bounds = array<i64: 16, 4>}, {transform_indices = @transform_3, window_bounds = array<i64: 1, 1, 128>}]} {
    %c0 = arith.constant 0 : index
    %c0_0 = arith.constant 0 : index
    %c0_1 = arith.constant 0 : index
    %c0_2 = arith.constant 0 : index
    %0 = vector.load %arg2[%c0, %c0_0, %c0_1, %c0_2] : memref<1x4x16x16xf32, #tpu.memory_space<vmem>>, vector<1x4x16x16xf32>
    %1 = vector.shape_cast %0 : vector<1x4x16x16xf32> to vector<64x16xf32>
    %c0_3 = arith.constant 0 : index
    %c0_4 = arith.constant 0 : index
    %2 = vector.load %arg3[%c0_3, %c0_4] : memref<4x64xf32, #tpu.memory_space<vmem>>, vector<4x64xf32>
    %cst = arith.constant dense<0.000000e+00> : vector<4x16xf32>
    %3 = tpu.matmul %2, %1, %cst {dimension_numbers = #tpu.dot_dimension_numbers<[1], [0], [0], [1], [0, 0, 1, 1], [], []>} : vector<4x64xf32>, vector<64x16xf32>, vector<4x16xf32> -> vector<4x16xf32>
    %c0_5 = arith.constant 0 : index
    %c0_6 = arith.constant 0 : index
    %4 = vector.load %arg4[%c0_5, %c0_6] : memref<16x4xf32, #tpu.memory_space<vmem>>, vector<16x4xf32>
    %cst_7 = arith.constant dense<0.000000e+00> : vector<4x4xf32>
    %5 = tpu.matmul %3, %4, %cst_7 {dimension_numbers = #tpu.dot_dimension_numbers<[1], [0], [0], [1], [0, 0, 1, 1], [], []>} : vector<4x16xf32>, vector<16x4xf32>, vector<4x4xf32> -> vector<4x4xf32>
    %cst_8 = arith.constant 1.562500e-02 : f32
    %6 = vector.broadcast %cst_8 : f32 to vector<4x4xf32>
    %7 = arith.mulf %5, %6 : vector<4x4xf32>
    %cst_9 = arith.constant 6.000000e-01 : f32
    %8 = vector.broadcast %cst_9 : f32 to vector<4x4xf32>
    %9 = arith.subf %7, %8 : vector<4x4xf32>
    %10 = arith.mulf %9, %9 : vector<4x4xf32>
    %11 = vector.shape_cast %10 : vector<4x4xf32> to vector<1x4x4xf32>
    %cst_10 = arith.constant dense<0.000000e+00> : vector<1xf32>
    %12 = vector.multi_reduction <add>, %11, %cst_10 [1, 2] : vector<1x4x4xf32> to vector<1xf32>
    %13 = vector.shape_cast %12 : vector<1xf32> to vector<1x1x1xf32>
    %14 = vector.extract %13[0, 0, 0] : f32 from vector<1x1x1xf32>
    %15 = vector.broadcast %14 : f32 to vector<1x1x128xf32>
    %c0_11 = arith.constant 0 : index
    %c0_12 = arith.constant 0 : index
    %c0_13 = arith.constant 0 : index
    %16 = vector.load %arg5[%c0_11, %c0_12, %c0_13] : memref<1x1x128xf32, #tpu.memory_space<vmem>>, vector<1x1x128xf32>
    tpu.vector_store %arg5[%c0_11, %c0_12, %c0_13], %15 {strides = array<i32>} : memref<1x1x128xf32, #tpu.memory_space<vmem>>, vector<1x1x128xf32>,
    return
  }
  func.func @transform_0(%arg0: i32, %arg1: i32) -> (i32, i32, i32, i32) {
    %c0_i32 = arith.constant 0 : i32
    %c0_i32_0 = arith.constant 0 : i32
    %c0_i32_1 = arith.constant 0 : i32
    return %arg0, %c0_i32, %arg1, %c0_i32_0 : i32, i32, i32, i32
  }
  func.func @transform_1(%arg0: i32, %arg1: i32) -> (i32, i32) {
    %c0_i32 = arith.constant 0 : i32
    %c0_i32_0 = arith.constant 0 : i32
    %c0_i32_1 = arith.constant 0 : i32
    return %c0_i32, %c0_i32_0 : i32, i32
  }
  func.func @transform_2(%arg0: i32, %arg1: i32) -> (i32, i32) {
    %c0_i32 = arith.constant 0 : i32
    %c0_i32_0 = arith.constant 0 : i32
    %c0_i32_1 = arith.constant 0 : i32
    return %c0_i32, %c0_i32_0 : i32, i32
  }
  func.func @transform_3(%arg0: i32, %arg1: i32) -> (i32, i32, i32) {
    %c1_i32 = arith.constant 1 : i32
    %0 = arith.muli %arg0, %c1_i32 : i32
    %1 = arith.addi %0, %arg1 : i32
    %c0_i32 = arith.constant 0 : i32
    %c0_i32_0 = arith.constant 0 : i32
    %c0_i32_1 = arith.constant 0 : i32
    return %1, %c0_i32, %c0_i32_0 : i32, i32, i32
  }
}

</mosaic_0001>

<llo_original>
// kernel: tpu_custom_call.1
$region0: #{tpu_custom_call.1}
  #allocation0 [shape = 'u32[]', space=smem, size = 0x4, offset = 0x4, fixed_abs, tag = 'smem constant byte address 0x4 - core index']
  #allocation1 [shape = 'u32[144,128]{1,0:T(1,128)}', space=vmem, size = 0x12000, scoped, tag = 'internal scratch']
  %s0 = inlined_call_operand.hbm [shape: f32[2,4,16,16], index: 0, kind: input, shape index: {}]
  %s1 = inlined_call_operand.vmem [shape: f32[4,64], index: 1, kind: input, shape index: {}]
  %s2 = inlined_call_operand.vmem [shape: f32[16,4], index: 2, kind: input, shape index: {}]
  %s3 = inlined_call_operand.hbm [shape: f32[2,1,128], index: 3, kind: output, shape index: {}]
  %s4 = sld [smem:[#allocation0]]
  $region49: #{tpu_custom_call.1} parent=0
    _
  %s6 = ssub.s32 1, %s4
  %s7 = scalar_select 0, %s6, %s4
  $region1: #{tpu_custom_call.1} parent=0
    #allocation2 [shape = 'u8[65536]{0}', space=vmem, size = 0x10000, scoped, tag = 'input window, operand 0']
    #allocation3 [shape = 's32[2]{0}', space=sflag, size = 0x8, scoped, tag = 'scoped memory for tpu_custom_call.1']
    #allocation4 [shape = 's32[2]{0}', space=sflag, size = 0x8, scoped, tag = 'scoped memory for tpu_custom_call.1']
    #allocation5 [shape = 'u8[1024]{0}', space=vmem, size = 0x400, scoped, tag = 'output window, operand 0']
    %8 = vsyncpa [#allocation3], 0
    %s9 = scalar_lea.sflag [#allocation3], 1
    %10 = vsyncpa %s9, 0
    %11 = vsyncpa [#allocation4], 0
    %s12 = scalar_lea.sflag [#allocation4], 1
    %13 = vsyncpa %s12, 0
    loop: start=0, step=1, limit=4
    $region2: #{tpu_custom_call.1} parent=1 // loop_pre_header
      _
    $region3: #{tpu_custom_call.1} parent=1 // loop_header
      %s15 = sphi 0, %s19
      %p16 = scmp.ge.s32.totalorder %s15, 4
      %s22 = sphi 0, %s34
      %s23 = sphi 0, %s30
      %s24 = sphi 0, %s22
      %s25 = sphi 0, %s23
      %s26 = sphi 0, %s24
      %s27 = sphi 0, %s25
      %s39 = sphi 0, %s41
      %s42 = sphi 0, %s39
      %s43 = sphi 0, %s42
      %s59 = sphi 0, %s43
      %s63 = sphi 0, %s63
      %s65 = sphi 0, %s63
      %s66 = sphi 0, %s65
      %s80 = sphi 0, %s66
      %s84 = sphi 0, %s84
      %s86 = sphi 0, %s84
      %s87 = sphi 0, %s86
      %s101 = sphi 0, %s87
      %s109 = sphi 0, %s111
      %s112 = sphi 0, %s109
      %s113 = sphi 0, %s112
      %s129 = sphi 0, %s113
    $region4: #{tpu_custom_call.1} parent=1 // loop_header_branch
      %18 = sbr.rel (%p16) target = $region8
    $region5: #{tpu_custom_call.1} parent=1 // loop_body
      %s20 = ssub.s32 %s15, 1
      %s21 = ssub.s32 %s15, 2
      %s28 = sadd.s32 1, %s23
      %p29 = scmp.ge.s32.totalorder %s28, 1
      %s30 = scalar_select %p29, 0, %s28
      %s31 = sadd.s32 1, %s22
      %s32 = scalar_select %p29, %s31, %s22
      %p33 = scmp.ge.s32.totalorder %s32, 2
      %s34 = scalar_select %p33, 0, %s32
      %s35 = ssub.s32 %s22, %s34
      %s36 = ssub.s32 %s23, %s30
      %s37 = sor.u32 %s35, %s36
      %p38 = scmp.eq.s32.totalorder %s37, 0
      %s40 = sadd.s32 %s39, 1
      %s41 = scalar_select %p38, %s39, %s40
      %p44 = pneg %p38
      %p45 = scmp.eq.s32.totalorder %s15, 1
      %p46 = por %p44, %p45
      %p47 = scmp.ne.s32.totalorder %s39, %s42
      %p48 = scmp.eq.s32.totalorder %s15, 0
      %p49 = por %p47, %p48
      %p50 = scmp.ne.s32.totalorder %s39, %s42
      %p51 = scmp.eq.s32.totalorder %s20, 1
      %p52 = por %p50, %p51
      %p53 = scmp.ne.s32.totalorder %s42, %s43
      %p54 = scmp.eq.s32.totalorder %s20, 0
      %p55 = por %p53, %p54
      %p56 = scmp.ne.s32.totalorder %s42, %s43
      %p57 = scmp.eq.s32.totalorder %s21, 1
      %p58 = por %p56, %p57
      %p60 = scmp.ne.s32.totalorder %s43, %s59
      %p61 = scmp.eq.s32.totalorder %s21, 0
      %p62 = por %p60, %p61
      %s64 = sadd.s32 %s63, 1
      %p67 = scmp.eq.s32.totalorder %s15, 1
      %p68 = scmp.ne.s32.totalorder %s63, %s65
      %p69 = scmp.eq.s32.totalorder %s15, 0
      %p70 = por %p68, %p69
      %p71 = scmp.ne.s32.totalorder %s63, %s65
      %p72 = scmp.eq.s32.totalorder %s20, 1
      %p73 = por %p71, %p72
      %p74 = scmp.ne.s32.totalorder %s65, %s66
      %p75 = scmp.eq.s32.totalorder %s20, 0
      %p76 = por %p74, %p75
      %p77 = scmp.ne.s32.totalorder %s65, %s66
      %p78 = scmp.eq.s32.totalorder %s21, 1
      %p79 = por %p77, %p78
      %p81 = scmp.ne.s32.totalorder %s66, %s80
      %p82 = scmp.eq.s32.totalorder %s21, 0
      %p83 = por %p81, %p82
      %s85 = sadd.s32 %s84, 1
      %p88 = scmp.eq.s32.totalorder %s15, 1
      %p89 = scmp.ne.s32.totalorder %s84, %s86
      %p90 = scmp.eq.s32.totalorder %s15, 0
      %p91 = por %p89, %p90
      %p92 = scmp.ne.s32.totalorder %s84, %s86
      %p93 = scmp.eq.s32.totalorder %s20, 1
      %p94 = por %p92, %p93
      %p95 = scmp.ne.s32.totalorder %s86, %s87
      %p96 = scmp.eq.s32.totalorder %s20, 0
      %p97 = por %p95, %p96
      %p98 = scmp.ne.s32.totalorder %s86, %s87
      %p99 = scmp.eq.s32.totalorder %s21, 1
      %p100 = por %p98, %p99
      %p102 = scmp.ne.s32.totalorder %s87, %s101
      %p103 = scmp.eq.s32.totalorder %s21, 0
      %p104 = por %p102, %p103
      %s105 = sadd.s32 %s22, %s23
      %s106 = sadd.s32 %s34, %s30
      %s107 = ssub.s32 %s105, %s106
      %p108 = scmp.eq.s32.totalorder %s107, 0
      %s110 = sadd.s32 %s109, 1
      %s111 = scalar_select %p108, %s109, %s110
      %p114 = pneg %p108
      %p115 = scmp.eq.s32.totalorder %s15, 1
      %p116 = por %p114, %p115
      %p117 = scmp.ne.s32.totalorder %s109, %s112
      %p118 = scmp.eq.s32.totalorder %s15, 0
      %p119 = por %p117, %p118
      %p120 = scmp.ne.s32.totalorder %s109, %s112
      %p121 = scmp.eq.s32.totalorder %s20, 1
      %p122 = por %p120, %p121
      %p123 = scmp.ne.s32.totalorder %s112, %s113
      %p124 = scmp.eq.s32.totalorder %s20, 0
      %p125 = por %p123, %p124
      %p126 = scmp.ne.s32.totalorder %s112, %s113
      %p127 = scmp.eq.s32.totalorder %s21, 1
      %p128 = por %p126, %p127
      %p130 = scmp.ne.s32.totalorder %s113, %s129
      %p131 = scmp.eq.s32.totalorder %s21, 0
      %p132 = por %p130, %p131
      %p133 = scmp.le.s32.totalorder 1, %s15
      %p134 = scmp.lt.s32.totalorder %s15, 3
      %p135 = pnand %p133, %p134
      %p136 = pneg %p135
      // Predicated region
      $region9: #{tpu_custom_call.1} parent=5 // pred_check
        _
      $region10: #{tpu_custom_call.1} parent=5 // pred_check_branch
        %138 = sbr.rel (%p135) target = $region12
      $region11: #{tpu_custom_call.1} parent=5 // pred_region
        %s139 = ssub.s32 %s15, 1
        // Predicated region
        $region13: #{tpu_custom_call.1} parent=11 // pred_check
          %p140 = pneg %p76
        $region14: #{tpu_custom_call.1} parent=11 // pred_check_branch
          %142 = sbr.rel (%p140) target = $region16
        $region15: #{tpu_custom_call.1} parent=11 // pred_region
          _
        $region16: #{tpu_custom_call.1} parent=11 // pred_fallthru
          _
        // Predicated region
        $region17: #{tpu_custom_call.1} parent=11 // pred_check
          %p143 = pneg %p97
        $region18: #{tpu_custom_call.1} parent=11 // pred_check_branch
          %145 = sbr.rel (%p143) target = $region20
        $region19: #{tpu_custom_call.1} parent=11 // pred_region
          _
        $region20: #{tpu_custom_call.1} parent=11 // pred_fallthru
          _
      $region12: #{tpu_custom_call.1} parent=5 // pred_fallthru
        _
      %p146 = scmp.lt.s32.totalorder %s15, 2
      // Predicated region
      $region21: #{tpu_custom_call.1} parent=5 // pred_check
        %p147 = pneg %p146
      $region22: #{tpu_custom_call.1} parent=5 // pred_check_branch
        %149 = sbr.rel (%p147) target = $region24
      $region23: #{tpu_custom_call.1} parent=5 // pred_region
        // Predicated region
        $region25: #{tpu_custom_call.1} parent=23 // pred_check
          %p150 = pneg %p49
        $region26: #{tpu_custom_call.1} parent=23 // pred_check_branch
          %152 = sbr.rel (%p150) target = $region28
        $region27: #{tpu_custom_call.1} parent=23 // pred_region
          %s153 = sand.u32 %s39, 1
          %s154 = scalar_lea.sflag [#allocation3], %s153
          %s155 = sand.u32 %s39, 1
          %s156 = smul.addr %s155, 64
          %s157 = scalar_lea.vmem [#allocation2], %s156
          %s158 = smul.u32 2, %s23
          %s160 = ssub.s32 1024, 1024
          %161 = vsyncadd %s154, %s160
          %s162 = smul.addr %s22, 8
          %s163 = sadd.s32 %s158, %s162
          %s164 = smul.addr %s163, 128
          %s165 = scalar_lea.hbm %s0, %s164
          %s166 = sshll.u32 %s157, 4
          %s167 = int_to_ptr.vmem [resolvable:$true] %s166
          %172 = dma.hbm_to_vmem [thread:$0]  %s165, 1024, %s167, %s154, 128, 128, 8
        $region28: #{tpu_custom_call.1} parent=23 // pred_fallthru
          _
      $region24: #{tpu_custom_call.1} parent=5 // pred_fallthru
        _
      %p173 = scmp.le.s32.totalorder 1, %s15
      %p174 = scmp.lt.s32.totalorder %s15, 3
      %p175 = pnand %p173, %p174
      %p176 = pneg %p175
      // Predicated region
      $region29: #{tpu_custom_call.1} parent=5 // pred_check
        _
      $region30: #{tpu_custom_call.1} parent=5 // pred_check_branch
        %178 = sbr.rel (%p175) target = $region32
      $region31: #{tpu_custom_call.1} parent=5 // pred_region
        %s179 = ssub.s32 %s15, 1
        %s180 = sand.u32 %s42, 1
        %s181 = scalar_lea.sflag [#allocation3], %s180
        %s182 = sand.u32 %s42, 1
        %s183 = smul.addr %s182, 64
        %s184 = scalar_lea.vmem [#allocation2], %s183
        // Predicated region
        $region33: #{tpu_custom_call.1} parent=31 // pred_check
          %p185 = pneg %p55
        $region34: #{tpu_custom_call.1} parent=31 // pred_check_branch
          %187 = sbr.rel (%p185) target = $region36
        $region35: #{tpu_custom_call.1} parent=31 // pred_region
          %188 = dma.done %s181, 1024
        $region36: #{tpu_custom_call.1} parent=31 // pred_fallthru
          _
        %s189 = sand.u32 %s42, 1
        %s190 = scalar_lea.sflag [#allocation3], %s189
        %s191 = sand.u32 %s42, 1
        %s192 = smul.addr %s191, 64
        %s193 = scalar_lea.vmem [#allocation2], %s192
        %p194 = pneg %p55
        %p195 = pneg %p52
        %p196 = pneg %p76
        %p197 = pneg %p73
        %p198 = pneg %p97
        %p199 = pneg %p94
        %p200 = pneg %p125
        %p201 = pneg %p122
        %s202 = sand.u32 %s112, 1
        %s203 = scalar_lea.sflag [#allocation4], %s202
        %s204 = sand.u32 %s112, 1
        %s205 = scalar_lea.vmem [#allocation5], %s204
        %s206 = smul.u32 2, %s25
        %s207 = sadd.s32 %s24, %s25
        %v208 = vld [vmem:[%s184] sm:$0xff]
        %v209 = vld [vmem:[%s184 + $0x8] sm:$0xff]
        %v210 = vld [vmem:[%s184 + $0x10] sm:$0xff]
        %v211 = vld [vmem:[%s184 + $0x18] sm:$0xff]
        %v212 = vld [vmem:[%s184 + $0x20] sm:$0xff]
        %v213 = vld [vmem:[%s184 + $0x28] sm:$0xff]
        %v214 = vld [vmem:[%s184 + $0x30] sm:$0xff]
        %v215 = vld [vmem:[%s184 + $0x38] sm:$0xff]
        %v216 = vld [vmem:[%s1] sm:$0xf]
        %vm217 = vcmask 523264
        %v219 = vsel %vm217, %v216, 0
        %221 = vmatprep.subr.mxu0 0.0
        %222 = vmatpush1.msra.mxu0 %v208
        %223 = vmatprep.subr.mxu0 0.0
        %224 = vmatpush1.msra.mxu0 %v209
        %225 = vmatprep.subr.mxu0 0.0
        %226 = vmatpush1.msra.mxu0 %v210
        %227 = vmatprep.subr.mxu0 0.0
        %228 = vmatpush1.msra.mxu0 %v211
        %229 = vmatprep.subr.mxu0 0.0
        %230 = vmatpush1.msra.mxu0 %v212
        %231 = vmatprep.subr.mxu0 0.0
        %232 = vmatpush1.msra.mxu0 %v213
        %233 = vmatprep.subr.mxu0 0.0
        %234 = vmatpush1.msra.mxu0 %v214
        %235 = vmatprep.subr.mxu0 0.0
        %236 = vmatpush1.msra.mxu0 %v215
        %237 = vmatprep.subr.mxu0 0.0
        %238 = vmatpush1.msra.mxu0 0.0
        %239 = vmatprep.subr.mxu0 0.0
        %240 = vmatpush1.msra.mxu0 0.0
        %241 = vmatprep.subr.mxu0 0.0
        %242 = vmatpush1.msra.mxu0 0.0
        %243 = vmatprep.subr.mxu0 0.0
        %244 = vmatpush1.msra.mxu0 0.0
        %245 = vmatprep.subr.mxu0 0.0
        %246 = vmatpush1.msra.mxu0 0.0
        %247 = vmatprep.subr.mxu0 0.0
        %248 = vmatpush1.msra.mxu0 0.0
        %249 = vmatprep.subr.mxu0 0.0
        %250 = vmatpush1.msra.mxu0 0.0
        %251 = vmatprep.subr.mxu0 0.0
        %252 = vmatpush1.msra.mxu0 0.0
        %253 = vmatprep.subr.mxu0 0.0
        %254 = vmatpush1.msra.mxu0 0.0
        %255 = vmatprep.subr.mxu0 0.0
        %256 = vmatpush1.msra.mxu0 0.0
        %257 = vmatprep.subr.mxu0 0.0
        %258 = vmatpush1.msra.mxu0 0.0
        %259 = vmatprep.subr.mxu0 0.0
        %260 = vmatpush1.msra.mxu0 0.0
        %261 = vmatprep.subr.mxu0 0.0
        %262 = vmatpush1.msra.mxu0 0.0
        %263 = vmatprep.subr.mxu0 0.0
        %264 = vmatpush1.msra.mxu0 0.0
        %265 = vmatprep.subr.mxu0 0.0
        %266 = vmatpush1.msra.mxu0 0.0
        %267 = vmatprep.subr.mxu0 0.0
        %268 = vmatpush1.msra.mxu0 0.0
        %269 = vmatprep.subr.mxu0 0.0
        %270 = vmatpush1.msra.mxu0 0.0
        %271 = vmatprep.subr.mxu0 0.0
        %272 = vmatpush1.msra.mxu0 0.0
        %273 = vmatprep.subr.mxu0 0.0
        %274 = vmatpush1.msra.mxu0 0.0
        %275 = vmatprep.subr.mxu0 0.0
        %276 = vmatpush1.msra.mxu0 0.0
        %277 = vmatprep.subr.mxu0 0.0
        %278 = vmatpush1.msra.mxu0 0.0
        %279 = vmatprep.subr.mxu0 0.0
        %280 = vmatpush1.msra.mxu0 0.0
        %281 = vmatprep.subr.mxu0 0.0
        %282 = vmatpush1.msra.mxu0 0.0
        %283 = vmatprep.subr.mxu0 0.0
        %284 = vmatpush1.msra.mxu0 0.0
        %285 = vmatprep.mubr.f32.mxu0 0.0
        %286 = vmatmul.mubr.f32.gmra.mrb[0].mxu0 %v219
        %v287 = vpop.f32.mrb[0].mxu0
        %v288 = vadd.f32 0.0, %v287
        %v289 = vpop.f32.mrb[0].mxu0
        %290 = vdwg.mxu0
        %v291 = vld [vmem:[%s2] sm:$0xff]
        %v292 = vld [vmem:[%s2 + $0x8] sm:$0xff]
        %vm293 = vcmask 130048
        %v295 = vsel %vm293, %v288, 0
        %297 = vmatprep.subr.mxu0 0.0
        %298 = vmatpush1.msra.mxu0 %v291
        %299 = vmatprep.subr.mxu0 0.0
        %300 = vmatpush1.msra.mxu0 %v292
        %301 = vmatprep.subr.mxu0 0.0
        %302 = vmatpush1.msra.mxu0 0.0
        %303 = vmatprep.subr.mxu0 0.0
        %304 = vmatpush1.msra.mxu0 0.0
        %305 = vmatprep.subr.mxu0 0.0
        %306 = vmatpush1.msra.mxu0 0.0
        %307 = vmatprep.subr.mxu0 0.0
        %308 = vmatpush1.msra.mxu0 0.0
        %309 = vmatprep.subr.mxu0 0.0
        %310 = vmatpush1.msra.mxu0 0.0
        %311 = vmatprep.subr.mxu0 0.0
        %312 = vmatpush1.msra.mxu0 0.0
        %313 = vmatprep.subr.mxu0 0.0
        %314 = vmatpush1.msra.mxu0 0.0
        %315 = vmatprep.subr.mxu0 0.0
        %316 = vmatpush1.msra.mxu0 0.0
        %317 = vmatprep.subr.mxu0 0.0
        %318 = vmatpush1.msra.mxu0 0.0
        %319 = vmatprep.subr.mxu0 0.0
        %320 = vmatpush1.msra.mxu0 0.0
        %321 = vmatprep.subr.mxu0 0.0
        %322 = vmatpush1.msra.mxu0 0.0
        %323 = vmatprep.subr.mxu0 0.0
        %324 = vmatpush1.msra.mxu0 0.0
        %325 = vmatprep.subr.mxu0 0.0
        %326 = vmatpush1.msra.mxu0 0.0
        %327 = vmatprep.subr.mxu0 0.0
        %328 = vmatpush1.msra.mxu0 0.0
        %329 = vmatprep.subr.mxu0 0.0
        %330 = vmatpush1.msra.mxu0 0.0
        %331 = vmatprep.subr.mxu0 0.0
        %332 = vmatpush1.msra.mxu0 0.0
        %333 = vmatprep.subr.mxu0 0.0
        %334 = vmatpush1.msra.mxu0 0.0
        %335 = vmatprep.subr.mxu0 0.0
        %336 = vmatpush1.msra.mxu0 0.0
        %337 = vmatprep.subr.mxu0 0.0
        %338 = vmatpush1.msra.mxu0 0.0
        %339 = vmatprep.subr.mxu0 0.0
        %340 = vmatpush1.msra.mxu0 0.0
        %341 = vmatprep.subr.mxu0 0.0
        %342 = vmatpush1.msra.mxu0 0.0
        %343 = vmatprep.subr.mxu0 0.0
        %344 = vmatpush1.msra.mxu0 0.0
        %345 = vmatprep.subr.mxu0 0.0
        %346 = vmatpush1.msra.mxu0 0.0
        %347 = vmatprep.subr.mxu0 0.0
        %348 = vmatpush1.msra.mxu0 0.0
        %349 = vmatprep.subr.mxu0 0.0
        %350 = vmatpush1.msra.mxu0 0.0
        %351 = vmatprep.subr.mxu0 0.0
        %352 = vmatpush1.msra.mxu0 0.0
        %353 = vmatprep.subr.mxu0 0.0
        %354 = vmatpush1.msra.mxu0 0.0
        %355 = vmatprep.subr.mxu0 0.0
        %356 = vmatpush1.msra.mxu0 0.0
        %357 = vmatprep.subr.mxu0 0.0
        %358 = vmatpush1.msra.mxu0 0.0
        %359 = vmatprep.subr.mxu0 0.0
        %360 = vmatpush1.msra.mxu0 0.0
        %361 = vmatprep.mubr.f32.mxu0 0.0
        %362 = vmatmul.mubr.f32.gmra.mrb[0].mxu0 %v295
        %v363 = vpop.f32.mrb[0].mxu0
        %v364 = vadd.f32 0.0, %v363
        %v365 = vpop.f32.mrb[0].mxu0
        %366 = vdwg.mxu0
        %v367 = vmul.f32 %v364, 0.015625
        %v368 = vsub.f32 %v367, 0.6
        %v369 = vmul.f32 %v368, %v368
        %vm370 = vcmask 27648
        %v371 = vsel %vm370, %v369, 0.0
        %372 = vadd.xlane.f32.xlu0 %v371
        %v373 = vpop.xlane.xlu0 %372
        %v374 = vrot.slane %v373, 4
        %v375 = vadd.f32 %v373, %v374
        %v376 = vrot.slane %v375, 2
        %v377 = vadd.f32 %v375, %v376
        %v378 = vrot.slane %v377, 1
        %v379 = vadd.f32 %v377, %v378
        %s380 = vtos %v379
        %v381 = vstv %s380
        %382 = vst [vmem:[%s205] sm:$0x1] %v381
        %s383 = sand.u32 %s112, 1
        %s384 = scalar_lea.sflag [#allocation4], %s383
        %s385 = sand.u32 %s112, 1
        %s386 = scalar_lea.vmem [#allocation5], %s385
        // Predicated region
        $region37: #{tpu_custom_call.1} parent=31 // pred_check
          %p387 = pneg %p122
        $region38: #{tpu_custom_call.1} parent=31 // pred_check_branch
          %389 = sbr.rel (%p387) target = $region40
        $region39: #{tpu_custom_call.1} parent=31 // pred_region
          %s390 = sadd.s32 %s24, %s25
          %s392 = ssub.s32 16, 16
          %393 = vsyncadd %s384, %s392
          %s394 = smul.addr %s390, 16
          %s395 = scalar_lea.hbm %s3, %s394
          %s397 = sshll.u32 %s386, 4
          %s398 = int_to_ptr.vmem [resolvable:$true] %s397
          %400 = dma.vmem_to_hbm [thread:$0]  %s398, 16, %s395, %s384
        $region40: #{tpu_custom_call.1} parent=31 // pred_fallthru
          _
      $region32: #{tpu_custom_call.1} parent=5 // pred_fallthru
        _
      %p401 = scmp.le.s32.totalorder 2, %s15
      // Predicated region
      $region41: #{tpu_custom_call.1} parent=5 // pred_check
        %p402 = pneg %p401
      $region42: #{tpu_custom_call.1} parent=5 // pred_check_branch
        %404 = sbr.rel (%p402) target = $region44
      $region43: #{tpu_custom_call.1} parent=5 // pred_region
        %s405 = ssub.s32 %s15, 2
        // Predicated region
        $region45: #{tpu_custom_call.1} parent=43 // pred_check
          %p406 = pneg %p128
        $region46: #{tpu_custom_call.1} parent=43 // pred_check_branch
          %408 = sbr.rel (%p406) target = $region48
        $region47: #{tpu_custom_call.1} parent=43 // pred_region
          %s409 = sand.u32 %s113, 1
          %s410 = scalar_lea.sflag [#allocation4], %s409
          %s411 = sand.u32 %s113, 1
          %s412 = scalar_lea.vmem [#allocation5], %s411
          %413 = dma.done %s410, 16
        $region48: #{tpu_custom_call.1} parent=43 // pred_fallthru
          _
      $region44: #{tpu_custom_call.1} parent=5 // pred_fallthru
        _
    $region6: #{tpu_custom_call.1} parent=1 // loop_footer
      %s19 = sadd.s32 1, %s15
    $region7: #{tpu_custom_call.1} parent=1 // loop_footer_branch
      %14 = sbr.rel target = $region3
    $region8: #{tpu_custom_call.1} parent=1 // loop_exit
      _
    %414 = vsyncpa [#allocation3], 1
    %s415 = scalar_lea.sflag [#allocation3], 1
    %416 = vsyncpa %s415, 1
    %417 = vsyncpa [#allocation4], 1
    %s418 = scalar_lea.sflag [#allocation4], 1
    %419 = vsyncpa %s418, 1

</llo_original>
